<compile_context>
chip_gen: v7x
topology: tpu7x:2x2x1
jax: 0.10.0
libtpu: 0.0.40
codegen_flags: <defaults>
</compile_context>

<pallas_src>
import jax
import jax.numpy as jnp
from jax import lax
from jax.experimental import pallas as pl
from jax.experimental.pallas import tpu as pltpu


def _round_up(x, m):
    return ((x + m - 1) // m) * m


def _cdiv(a, b):
    return -(-a // b)


# ---------------------------------------------------------------------------
# Kernels
# ---------------------------------------------------------------------------

def _linear_kernel_fused(x_ref, w_ref, b_ref, o_ref):
    """Single reduction step: whole feature axis contracted at once.

    x_ref: [tm, D]   activation tile
    w_ref: [tn, D]   weight tile, PyTorch [C, D] layout (contract last dims)
    b_ref: [1,  tn]  bias tile
    o_ref: [tm, tn]  output tile
    """
    acc = lax.dot_general(
        x_ref[...], w_ref[...],
        dimension_numbers=(((1,), (1,)), ((), ())),
        preferred_element_type=jnp.float32)
    o_ref[...] = (acc + b_ref[...]).astype(o_ref.dtype)


def _linear_kernel_ktiled(x_ref, w_ref, b_ref, o_ref, acc_ref):
    """Fallback for very large feature dims: K-tiled f32 accumulator."""
    k = pl.program_id(2)

    @pl.when(k == 0)
    def _():
        acc_ref[...] = jnp.zeros_like(acc_ref)

    acc_ref[...] += lax.dot_general(
        x_ref[...], w_ref[...],
        dimension_numbers=(((1,), (1,)), ((), ())),
        preferred_element_type=jnp.float32)

    @pl.when(k == pl.num_programs(2) - 1)
    def _():
        o_ref[...] = (acc_ref[...] + b_ref[...]).astype(o_ref.dtype)


# ---------------------------------------------------------------------------
# Tile selection (per-generation, VMEM-budgeted)
# ---------------------------------------------------------------------------

def _vmem_limit_bytes():
    phys = None
    try:
        phys = getattr(pltpu.get_tpu_info(), "vmem_capacity_bytes", None)
    except Exception:
        phys = None
    if not phys:
        phys = 64 * 1024 * 1024          # conservative: v7x per-core VMEM
    return int(phys * 0.75)              # leave headroom for compiler scratch


def _choose_tiles(B, C, D, itemsize, budget):
    """Returns (tm, tn, tk); tk is None for the single-reduction-step path."""
    Bp = _round_up(max(B, 1), 8)
    Cp = _round_up(max(C, 1), 128)
    Dp = _round_up(max(D, 1), 128)

    # Full batch in one tile whenever reasonable, so the weight (dominant HBM
    # stream) is streamed exactly once per call.
    tm = Bp if Bp <= 1024 else 512

    tn_cands = [t for t in (2048, 1024, 512, 256, 128) if t <= Cp] or [128]

    def fits_single(tm_, tn_):
        tiles = 2 * (tm_ * Dp + tn_ * Dp + tn_) * itemsize   # dbl-buffered in
        tiles += 2 * tm_ * tn_ * itemsize                     # dbl-buffered out
        return tiles <= budget

    def fits_ktiled(tm_, tn_, tk_):
        tiles = 2 * (tm_ * tk_ + tn_ * tk_ + tn_) * itemsize
        tiles += 2 * tm_ * tn_ * itemsize
        tiles += tm_ * tn_ * 4                                # f32 accumulator
        return tiles <= budget

    # Preferred: contract all of D in one step (no accumulator round trips).
    for tn in tn_cands:
        if fits_single(tm, tn):
            return tm, tn, None

    # Fallback: K-tiled reduction.
    tk_cands = [t for t in (2048, 1024, 512, 256, 128) if t <= Dp] or [128]
    for tk in tk_cands:
        for tn in tn_cands:
            if fits_ktiled(tm, tn, tk):
                return tm, tn, tk

    # Last resort: shrink the batch tile as well.
    for tm_try in (512, 256, 128, 64, 32, 16, 8):
        if tm_try >= tm:
            continue
        for tk in tk_cands:
            for tn in tn_cands:
                if fits_ktiled(tm_try, tn, tk):
                    return tm_try, tn, tk
    return 8, 128, 128


# ---------------------------------------------------------------------------
# Wrapper
# ---------------------------------------------------------------------------

def linear_classifier_forward(x, weight, bias, *, force_pallas=False):
    """y = x @ weight.T + bias (PyTorch nn.Linear semantics).

    x:      [B, D]
    weight: [C, D]  (PyTorch layout; consumed as-is, no transpose copy)
    bias:   [C]
    returns [B, C]
    """
    B, D = x.shape
    C, D_w = weight.shape
    assert D == D_w, "weight last dim must match x feature dim"

    # Tiny problems: a single fused XLA dot beats any kernel (fixed grid-step
    # overhead and D padding dominate).  force_pallas exercises the kernel.
    if not force_pallas and B * C * D < (1 << 18):
        return x @ weight.T + bias

    itemsize = jnp.dtype(x.dtype).itemsize
    vmem_limit = _vmem_limit_bytes()
    tile_budget = int(vmem_limit * 0.85)

    tm, tn, tk = _choose_tiles(B, C, D, itemsize, tile_budget)

    # Only the contraction axis needs padding (zero cols are inert).  B / C
    # are handled by ragged edge blocks whose garbage never reaches the
    # (B, C) output buffer.
    Dpad = _round_up(D, 128) if tk is None else _round_up(D, tk)
    if Dpad != D:
        x = jnp.pad(x, ((0, 0), (0, Dpad - D)))
        weight = jnp.pad(weight, ((0, 0), (0, Dpad - D)))

    nk = 1 if tk is None else Dpad // tk
    if nk == 1:
        tk = Dpad

    nb = _cdiv(B, tm)
    nc = _cdiv(C, tn)
    # Keep at least two parallel grid blocks when possible so v7x's two
    # TensorCores both get work.
    if nb == 1 and nc == 1 and _round_up(C, 128) >= 256:
        tn = _round_up(_cdiv(_round_up(C, 128), 2), 128)
        nc = _cdiv(C, tn)

    bias2d = bias.reshape(1, C)

    cost = pl.CostEstimate(
        flops=2 * B * C * D,
        transcendentals=0,
        bytes_accessed=(B * D + C * D + B * C + C) * itemsize)

    compiler_params = pltpu.CompilerParams(
        dimension_semantics=(("parallel", "parallel") if nk == 1
                             else ("parallel", "parallel", "arbitrary")),
        vmem_limit_bytes=vmem_limit)

    if nk == 1:
        grid = (nb, nc)
        in_specs = [
            pl.BlockSpec((tm, tk), lambda i, j: (i, 0)),    # x
            pl.BlockSpec((tn, tk), lambda i, j: (j, 0)),    # weight [C, D]
            pl.BlockSpec((1, tn), lambda i, j: (0, j)),     # bias
        ]
        out_specs = pl.BlockSpec((tm, tn), lambda i, j: (i, j))
        scratch = []
        kernel = _linear_kernel_fused
    else:
        grid = (nb, nc, nk)
        in_specs = [
            pl.BlockSpec((tm, tk), lambda i, j, k: (i, k)),  # x
            pl.BlockSpec((tn, tk), lambda i, j, k: (j, k)),  # weight [C, D]
            pl.BlockSpec((1, tn), lambda i, j, k: (0, j)),   # bias
        ]
        out_specs = pl.BlockSpec((tm, tn), lambda i, j, k: (i, j))
        scratch = [pltpu.VMEM((tm, tn), jnp.float32)]
        kernel = _linear_kernel_ktiled

    return pl.pallas_call(
        kernel,
        out_shape=jax.ShapeDtypeStruct((B, C), x.dtype),
        grid_spec=pltpu.PrefetchScalarGridSpec(
            num_scalar_prefetch=0,
            grid=grid,
            in_specs=in_specs,
            out_specs=out_specs,
            scratch_shapes=scratch),
        compiler_params=compiler_params,
        cost_estimate=cost,
    )(x, weight, bias2d)


if __name__ == "__main__":
    # Small shapes implied by nn.Linear(input_size, num_classes)
    batch, input_size, num_classes = 8, 32, 16

    key = jax.random.PRNGKey(0)
    kx, kw, kb = jax.random.split(key, 3)

    x = jax.random.normal(kx, (batch, input_size), dtype=jnp.float32)
    # PyTorch-style uniform(-1/sqrt(D), 1/sqrt(D)) init
    bound = 1.0 / (input_size ** 0.5)
    weight = jax.random.uniform(kw, (num_classes, input_size),
                                minval=-bound, maxval=bound, dtype=jnp.float32)
    bias = jax.random.uniform(kb, (num_classes,),
                              minval=-bound, maxval=bound, dtype=jnp.float32)

    out = linear_classifier_forward(x, weight, bias, force_pallas=True)
    out = jax.block_until_ready(out)

    # Reference check against plain JAX
    ref = x @ weight.T + bias
    assert out.shape == (batch, num_classes)
    assert jnp.allclose(out, ref, atol=1e-5, rtol=1e-5)

    print("KERNEL_OK")
</pallas_src>

<mosaic_0001>
module attributes {stable_mosaic.version = 11 : i64} {
  func.func @_linear_kernel_fused(%arg0: i32, %arg1: i32, %arg2: memref<8x128xf32, #tpu.memory_space<vmem>>, %arg3: memref<128x128xf32, #tpu.memory_space<vmem>>, %arg4: memref<1x128xf32, #tpu.memory_space<vmem>>, %arg5: memref<8x128xf32, #tpu.memory_space<vmem>>) attributes {dimension_semantics = [#tpu.dimension_semantics<parallel>, #tpu.dimension_semantics<parallel>], iteration_bounds = array<i64: 1, 1>, scalar_prefetch = 0 : i64, scratch_operands = 0 : i64, tpu.core_type = #tpu.core_type<tc>, window_params = [{transform_indices = @transform_0, window_bounds = array<i64: 8, 128>}, {transform_indices = @transform_1, window_bounds = array<i64: 128, 128>}, {transform_indices = @transform_2, window_bounds = array<i64: 1, 128>}, {transform_indices = @transform_3, window_bounds = array<i64: 8, 128>}]} {
    %c0 = arith.constant 0 : index
    %c0_0 = arith.constant 0 : index
    %0 = vector.load %arg2[%c0, %c0_0] : memref<8x128xf32, #tpu.memory_space<vmem>>, vector<8x128xf32>
    %c0_1 = arith.constant 0 : index
    %c0_2 = arith.constant 0 : index
    %1 = vector.load %arg3[%c0_1, %c0_2] : memref<128x128xf32, #tpu.memory_space<vmem>>, vector<128x128xf32>
    %cst = arith.constant dense<0.000000e+00> : vector<8x128xf32>
    %2 = tpu.matmul %0, %1, %cst {dimension_numbers = #tpu.dot_dimension_numbers<[1], [1], [0], [0], [0, 0, 1, 0], [], []>} : vector<8x128xf32>, vector<128x128xf32>, vector<8x128xf32> -> vector<8x128xf32>
    %c0_3 = arith.constant 0 : index
    %c0_4 = arith.constant 0 : index
    %3 = vector.load %arg4[%c0_3, %c0_4] : memref<1x128xf32, #tpu.memory_space<vmem>>, vector<1x128xf32>
    %4 = vector.broadcast %3 : vector<1x128xf32> to vector<8x128xf32>
    %5 = arith.addf %2, %4 : vector<8x128xf32>
    %c0_5 = arith.constant 0 : index
    %c0_6 = arith.constant 0 : index
    %6 = vector.load %arg5[%c0_5, %c0_6] : memref<8x128xf32, #tpu.memory_space<vmem>>, vector<8x128xf32>
    tpu.vector_store %arg5[%c0_5, %c0_6], %5 {strides = array<i32>} : memref<8x128xf32, #tpu.memory_space<vmem>>, vector<8x128xf32>,
    return
  }
  func.func @transform_0(%arg0: i32, %arg1: i32) -> (i32, i32) {
    %c0_i32 = arith.constant 0 : i32
    %c0_i32_0 = arith.constant 0 : i32
    return %arg0, %c0_i32 : i32, i32
  }
  func.func @transform_1(%arg0: i32, %arg1: i32) -> (i32, i32) {
    %c0_i32 = arith.constant 0 : i32
    %c0_i32_0 = arith.constant 0 : i32
    return %arg1, %c0_i32 : i32, i32
  }
  func.func @transform_2(%arg0: i32, %arg1: i32) -> (i32, i32) {
    %c0_i32 = arith.constant 0 : i32
    %c0_i32_0 = arith.constant 0 : i32
    return %c0_i32, %arg1 : i32, i32
  }
  func.func @transform_3(%arg0: i32, %arg1: i32) -> (i32, i32) {
    %c0_i32 = arith.constant 0 : i32
    return %arg0, %arg1 : i32, i32
  }
}

</mosaic_0001>

<llo_original>
// kernel: tpu_custom_call.1
$region0: #{tpu_custom_call.1}
  #allocation0 [shape = 'u32[]', space=smem, size = 0x4, offset = 0x4, fixed_abs, tag = 'smem constant byte address 0x4 - core index']
  #allocation1 [shape = 'u32[144,128]{1,0:T(1,128)}', space=vmem, size = 0x12000, scoped, tag = 'internal scratch']
  %s0 = inlined_call_operand.hbm [shape: f32[8,128], index: 0, kind: input, shape index: {}]
  %s1 = inlined_call_operand.hbm [shape: f32[16,128], index: 1, kind: input, shape index: {}]
  %s2 = inlined_call_operand.vmem [shape: f32[1,16], index: 2, kind: input, shape index: {}]
  %s3 = inlined_call_operand.hbm [shape: f32[8,16], index: 3, kind: output, shape index: {}]
  %s4 = sld [smem:[#allocation0]]
  $region30: #{tpu_custom_call.1} parent=0
    _
  %s6 = ssub.s32 1, %s4
  %s7 = scalar_select 0, %s6, %s4
  $region1: #{tpu_custom_call.1} parent=0
    #allocation2 [shape = 'u8[4096]{0}', space=vmem, size = 0x1000, scoped, tag = 'input window, operand 0, single buffered']
    #allocation3 [shape = 's32[1]{0}', space=sflag, size = 0x4, scoped, tag = 'scoped memory for tpu_custom_call.1']
    #allocation4 [shape = 's32[1]{0}', space=sflag, size = 0x4, scoped, tag = 'scoped memory for tpu_custom_call.1']
    #allocation5 [shape = 'u8[65536]{0}', space=vmem, size = 0x10000, scoped, tag = 'input window, operand 1, single buffered']
    #allocation6 [shape = 's32[1]{0}', space=sflag, size = 0x4, scoped, tag = 'scoped memory for tpu_custom_call.1']
    #allocation7 [shape = 'u8[4096]{0}', space=vmem, size = 0x1000, scoped, tag = 'output window, operand 0, single buffered']
    %8 = vsyncpa [#allocation3], 0
    %9 = vsyncpa [#allocation6], 0
    %10 = vsyncpa [#allocation4], 0
    // Predicated region
    $region2: #{tpu_custom_call.1} parent=1 // pred_check
      _
    $region3: #{tpu_custom_call.1} parent=1 // pred_check_branch
      %12 = sbr.rel (0) target = $region5
    $region4: #{tpu_custom_call.1} parent=1 // pred_region
      %s14 = ssub.s32 128, 128
      %15 = vsyncadd [#allocation3], %s14
      %s17 = sshll.u32 [#allocation2], 4
      %s18 = int_to_ptr.vmem [resolvable:$true] %s17
      %20 = dma.hbm_to_vmem [thread:$0]  %s0, 128, %s18, [#allocation3]
    $region5: #{tpu_custom_call.1} parent=1 // pred_fallthru
      _
    // Predicated region
    $region6: #{tpu_custom_call.1} parent=1 // pred_check
      _
    $region7: #{tpu_custom_call.1} parent=1 // pred_check_branch
      %22 = sbr.rel (0) target = $region9
    $region8: #{tpu_custom_call.1} parent=1 // pred_region
      %s24 = ssub.s32 2048, 256
      %25 = vsyncadd [#allocation6], %s24
      %s26 = sshll.u32 [#allocation5], 4
      %s27 = int_to_ptr.vmem [resolvable:$true] %s26
      %32 = dma.hbm_to_vmem [thread:$0]  %s1, 256, %s27, [#allocation6], 128, 128, 8
    $region9: #{tpu_custom_call.1} parent=1 // pred_fallthru
      _
    // Predicated region
    $region10: #{tpu_custom_call.1} parent=1 // pred_check
      _
    $region11: #{tpu_custom_call.1} parent=1 // pred_check_branch
      %34 = sbr.rel (0) target = $region13
    $region12: #{tpu_custom_call.1} parent=1 // pred_region
      _
    $region13: #{tpu_custom_call.1} parent=1 // pred_fallthru
      _
    // Predicated region
    $region14: #{tpu_custom_call.1} parent=1 // pred_check
      _
    $region15: #{tpu_custom_call.1} parent=1 // pred_check_branch
      %36 = sbr.rel (0) target = $region17
    $region16: #{tpu_custom_call.1} parent=1 // pred_region
      %37 = dma.done [#allocation3], 128
    $region17: #{tpu_custom_call.1} parent=1 // pred_fallthru
      _
    // Predicated region
    $region18: #{tpu_custom_call.1} parent=1 // pred_check
      _
    $region19: #{tpu_custom_call.1} parent=1 // pred_check_branch
      %39 = sbr.rel (0) target = $region21
    $region20: #{tpu_custom_call.1} parent=1 // pred_region
      %40 = dma.done [#allocation6], 2048
    $region21: #{tpu_custom_call.1} parent=1 // pred_fallthru
      _
    %v41 = vld [vmem:[#allocation2] sm:$0xff]
    %v42 = vld [vmem:[#allocation5] sm:$0xff]
    %v43 = vld [vmem:[#allocation5 + $0x8] sm:$0xff]
    %v44 = vld [vmem:[#allocation5 + $0x10] sm:$0xff]
    %v45 = vld [vmem:[#allocation5 + $0x18] sm:$0xff]
    %v46 = vld [vmem:[#allocation5 + $0x20] sm:$0xff]
    %v47 = vld [vmem:[#allocation5 + $0x28] sm:$0xff]
    %v48 = vld [vmem:[#allocation5 + $0x30] sm:$0xff]
    %v49 = vld [vmem:[#allocation5 + $0x38] sm:$0xff]
    %v50 = vld [vmem:[#allocation5 + $0x40] sm:$0xff]
    %v51 = vld [vmem:[#allocation5 + $0x48] sm:$0xff]
    %v52 = vld [vmem:[#allocation5 + $0x50] sm:$0xff]
    %v53 = vld [vmem:[#allocation5 + $0x58] sm:$0xff]
    %v54 = vld [vmem:[#allocation5 + $0x60] sm:$0xff]
    %v55 = vld [vmem:[#allocation5 + $0x68] sm:$0xff]
    %v56 = vld [vmem:[#allocation5 + $0x70] sm:$0xff]
    %v57 = vld [vmem:[#allocation5 + $0x78] sm:$0xff]
    %v58 = vld [vmem:[%s2] sm:$0x1]
    %v60 = vlaneseq
    %v61 = vshrl.u32 %v60, 7
    %v62 = vsub.s32 0, %v61
    %v63 = vrot.slane %v58, %v62
    %65 = vmatprep.subr.mxu0 0.0
    %66 = vmatpush1.xpose.msra.mxu0 %v42
    %67 = vmatprep.subr.mxu0 0.0
    %68 = vmatpush1.xpose.msra.mxu0 %v43
    %69 = vmatprep.subr.mxu0 0.0
    %70 = vmatpush1.xpose.msra.mxu0 %v44
    %71 = vmatprep.subr.mxu0 0.0
    %72 = vmatpush1.xpose.msra.mxu0 %v45
    %73 = vmatprep.subr.mxu0 0.0
    %74 = vmatpush1.xpose.msra.mxu0 %v46
    %75 = vmatprep.subr.mxu0 0.0
    %76 = vmatpush1.xpose.msra.mxu0 %v47
    %77 = vmatprep.subr.mxu0 0.0
    %78 = vmatpush1.xpose.msra.mxu0 %v48
    %79 = vmatprep.subr.mxu0 0.0
    %80 = vmatpush1.xpose.msra.mxu0 %v49
    %81 = vmatprep.subr.mxu0 0.0
    %82 = vmatpush1.xpose.msra.mxu0 %v50
    %83 = vmatprep.subr.mxu0 0.0
    %84 = vmatpush1.xpose.msra.mxu0 %v51
    %85 = vmatprep.subr.mxu0 0.0
    %86 = vmatpush1.xpose.msra.mxu0 %v52
    %87 = vmatprep.subr.mxu0 0.0
    %88 = vmatpush1.xpose.msra.mxu0 %v53
    %89 = vmatprep.subr.mxu0 0.0
    %90 = vmatpush1.xpose.msra.mxu0 %v54
    %91 = vmatprep.subr.mxu0 0.0
    %92 = vmatpush1.xpose.msra.mxu0 %v55
    %93 = vmatprep.subr.mxu0 0.0
    %94 = vmatpush1.xpose.msra.mxu0 %v56
    %95 = vmatprep.subr.mxu0 0.0
    %96 = vmatpush1.xpose.msra.mxu0 %v57
    %97 = vmatprep.subr.mxu0 0.0
    %98 = vmatpush1.xpose.msra.mxu0 0.0
    %99 = vmatprep.subr.mxu0 0.0
    %100 = vmatpush1.xpose.msra.mxu0 0.0
    %101 = vmatprep.subr.mxu0 0.0
    %102 = vmatpush1.xpose.msra.mxu0 0.0
    %103 = vmatprep.subr.mxu0 0.0
    %104 = vmatpush1.xpose.msra.mxu0 0.0
    %105 = vmatprep.subr.mxu0 0.0
    %106 = vmatpush1.xpose.msra.mxu0 0.0
    %107 = vmatprep.subr.mxu0 0.0
    %108 = vmatpush1.xpose.msra.mxu0 0.0
    %109 = vmatprep.subr.mxu0 0.0
    %110 = vmatpush1.xpose.msra.mxu0 0.0
    %111 = vmatprep.subr.mxu0 0.0
    %112 = vmatpush1.xpose.msra.mxu0 0.0
    %113 = vmatprep.subr.mxu0 0.0
    %114 = vmatpush1.xpose.msra.mxu0 0.0
    %115 = vmatprep.subr.mxu0 0.0
    %116 = vmatpush1.xpose.msra.mxu0 0.0
    %117 = vmatprep.subr.mxu0 0.0
    %118 = vmatpush1.xpose.msra.mxu0 0.0
    %119 = vmatprep.subr.mxu0 0.0
    %120 = vmatpush1.xpose.msra.mxu0 0.0
    %121 = vmatprep.subr.mxu0 0.0
    %122 = vmatpush1.xpose.msra.mxu0 0.0
    %123 = vmatprep.subr.mxu0 0.0
    %124 = vmatpush1.xpose.msra.mxu0 0.0
    %125 = vmatprep.subr.mxu0 0.0
    %126 = vmatpush1.xpose.msra.mxu0 0.0
    %127 = vmatprep.subr.mxu0 0.0
    %128 = vmatpush1.xpose.msra.mxu0 0.0
    %129 = vmatprep.mubr.f32.mxu0 0.0
    %130 = vmatmul.mubr.f32.gmra.mrb[0].mxu0 %v41
    %v131 = vpop.f32.mrb[0].mxu0
    %v132 = vadd.f32 %v63, %v131
    %v133 = vpop.f32.mrb[0].mxu0
    %134 = vdwg.mxu0
    %135 = vst [vmem:[#allocation7] sm:$0xff] %v132
    // Predicated region
    $region22: #{tpu_custom_call.1} parent=1 // pred_check
      _
    $region23: #{tpu_custom_call.1} parent=1 // pred_check_branch
      %137 = sbr.rel (0) target = $region25
    $region24: #{tpu_custom_call.1} parent=1 // pred_region
      %s139 = ssub.s32 128, 128
      %140 = vsyncadd [#allocation4], %s139
      %s142 = sshll.u32 [#allocation7], 4
      %s143 = int_to_ptr.vmem [resolvable:$true] %s142
      %145 = dma.vmem_to_hbm [thread:$0]  %s143, 128, %s3, [#allocation4]
    $region25: #{tpu_custom_call.1} parent=1 // pred_fallthru
      _
    // Predicated region
    $region26: #{tpu_custom_call.1} parent=1 // pred_check
      _
    $region27: #{tpu_custom_call.1} parent=1 // pred_check_branch
      %147 = sbr.rel (0) target = $region29
    $region28: #{tpu_custom_call.1} parent=1 // pred_region
      %148 = dma.done [#allocation4], 128
    $region29: #{tpu_custom_call.1} parent=1 // pred_fallthru
      _
    %149 = vsyncpa [#allocation3], 1
    %150 = vsyncpa [#allocation6], 1
    %151 = vsyncpa [#allocation4], 1

</llo_original>
